<compile_context>
chip_gen: v7x
topology: tpu7x:2x2x1
jax: 0.10.0
libtpu: 0.0.40
codegen_flags: <defaults>
</compile_context>

<pallas_src>
import functools
import numpy as np
import jax
import jax.numpy as jnp
from jax import lax
from jax.experimental import pallas as pl
from jax.experimental.pallas import tpu as pltpu

LN_EPS = 1e-5


def _round_up(x, m):
    return ((x + m - 1) // m) * m


# ----------------------------------------------------------------------------
# Pallas kernel: bt graphs per grid step.
#   x_ref  : [bt, r_pad, C_in]        bf16   (rows >= S are zero)
#   w1_ref : [C_in, 2*hid_pad]        bf16   (q cols [0:hid], k cols [hid_pad:hid_pad+hid])
#   w2_ref : [2*hid_pad, 2*c_pad]     bf16   (block-diagonal Wq2 / Wk2)
#   vec_ref: [8, slab_w]              f32    (row0=b1, row1=gamma, row2=beta, row3=b2)
#   o_ref  : [bt, r_pad, s_pad]       f32/bf16
# ----------------------------------------------------------------------------
def _instance_head_kernel(x_ref, w1_ref, w2_ref, vec_ref, o_ref,
                          *, bt, r_pad, s_pad, hid, hid_pad, c_pad):
    c_in = x_ref.shape[-1]
    rows = bt * r_pad
    x = x_ref[...].reshape(rows, c_in)                       # [R, C_in] bf16
    vec = vec_ref[...]                                       # [8, slab_w] f32

    # Fused first linear for q and k: one MXU pass, N = 2*hid_pad.
    h = jnp.dot(x, w1_ref[...], preferred_element_type=jnp.float32)
    h = h + vec[0:1, :2 * hid_pad]                           # bias (f32)

    # mask of the true-hid lanes inside each 128-padded half
    lane = lax.broadcasted_iota(jnp.int32, (1, hid_pad), 1)
    valid = (lane < hid).astype(jnp.float32)                 # [1, hid_pad]
    inv_hid = 1.0 / float(hid)

    def ln_relu(v, g, beta):
        # Two-pass LayerNorm over the true `hid` lanes (padded lanes are 0 in
        # v, gamma and beta, and masked out of the variance).
        mu = jnp.sum(v, axis=-1, keepdims=True) * inv_hid
        c = (v - mu) * valid
        var = jnp.sum(c * c, axis=-1, keepdims=True) * inv_hid
        vn = c * lax.rsqrt(var + LN_EPS)
        return jnp.maximum(vn * g + beta, 0.0)               # dropout = identity

    gam = vec[1:2, :2 * hid_pad]
    bet = vec[2:3, :2 * hid_pad]
    hq = ln_relu(h[:, :hid_pad], gam[:, :hid_pad], bet[:, :hid_pad])
    hk = ln_relu(h[:, hid_pad:2 * hid_pad],
                 gam[:, hid_pad:2 * hid_pad], bet[:, hid_pad:2 * hid_pad])
    hcat = jnp.concatenate([hq, hk], axis=-1).astype(jnp.bfloat16)   # [R, 2*hid_pad]

    # Fused second linear (block-diagonal weights): one MXU pass.
    qk = jnp.dot(hcat, w2_ref[...], preferred_element_type=jnp.float32)
    qk = qk + vec[3:4, :2 * c_pad]                           # [R, 2*c_pad] f32

    q3 = qk[:, :c_pad].reshape(bt, r_pad, c_pad).astype(jnp.bfloat16)
    k3 = qk[:, c_pad:2 * c_pad].reshape(bt, r_pad, c_pad).astype(jnp.bfloat16)

    # k-side padding to s_pad rows; padded rows are zero so output columns
    # >= r_pad are exactly zero (and everything >= S is sliced off outside).
    if s_pad > r_pad:
        k3p = jnp.concatenate(
            [k3, jnp.zeros((bt, s_pad - r_pad, c_pad), jnp.bfloat16)], axis=1)
    else:
        k3p = k3

    # Per-batch q @ k^T: contract last (feature) dims, batch over dim 0.
    # Zero-padded feature lanes of q/k contribute nothing to the contraction.
    # TODO(synk): check lowered MLIR for a vxpose of k3p; emit k^T if present.
    o_ref[...] = lax.dot_general(
        q3, k3p,
        dimension_numbers=(((2,), (2,)), ((0,), (0,))),
        preferred_element_type=jnp.float32).astype(o_ref.dtype)


# ----------------------------------------------------------------------------
# Tiling / VMEM accounting
# ----------------------------------------------------------------------------
def _vmem_capacity_bytes():
    try:
        info = pltpu.get_tpu_info()
        cap = getattr(info, "vmem_capacity_bytes", None)
        if cap:
            return int(cap)
    except Exception:
        pass
    return 64 << 20  # conservative default (v7x per-TC VMEM)


def _estimate_vmem_bytes(bt, r_pad, s_pad, c_lane, hid2, cout2):
    """Conservative per-step VMEM estimate: pipelined blocks + intermediates."""
    rows = bt * r_pad
    x_blk = bt * r_pad * c_lane * 2                  # bf16 input block (lane padded)
    o_blk = bt * r_pad * s_pad * 4                   # f32 output block
    pipelined = 2 * (x_blk + o_blk)                  # double buffered
    inter = (rows * hid2 * 4                         # h (f32)
             + rows * hid2 * 4                       # LN/ReLU result (f32)
             + rows * hid2 * 2                       # hcat (bf16)
             + rows * cout2 * 4                      # qk (f32)
             + rows * cout2 * 2                      # q3/k3 (bf16)
             + bt * s_pad * (cout2 // 2) * 2         # padded k (bf16)
             + bt * r_pad * s_pad * 4)               # bmm accumulator (f32)
    weights = 2 * (c_lane * hid2 * 2 + hid2 * cout2 * 2 + 8 * max(hid2, cout2) * 4)
    return pipelined + inter + weights


def _choose_bt(B, r_pad, s_pad, c_lane, hid2, cout2, budget):
    # Cap at B//2 so the grid keeps >= 2 steps (v7x megacore can shard it).
    cap = max(1, B // 2) if B >= 2 else 1
    best = 1
    for bt in range(1, cap + 1):
        if _estimate_vmem_bytes(bt, r_pad, s_pad, c_lane, hid2, cout2) <= budget:
            best = bt
    return best


# ----------------------------------------------------------------------------
# Wrapper
# ----------------------------------------------------------------------------
def instance_head_pallas(padded_hidden, packed, out_dtype=jnp.float32):
    """padded_hidden: [B, S, C_in] float32. Returns [B, S, S] float32."""
    B, S, C = padded_hidden.shape
    hid, hid_pad = packed["hid"], packed["hid_pad"]
    c_pad = packed["c_pad"]
    w1, w2, vec = packed["w1"], packed["w2"], packed["vec"]

    r_pad = _round_up(max(S, 8), 8)          # q-row / MLP-row padding (sublane)
    s_pad = _round_up(max(S, 128), 128)      # k-column padding (lane-dense store)

    vmem_cap = _vmem_capacity_bytes()
    vmem_limit = min(vmem_cap * 3 // 4, 96 << 20)
    budget = max(vmem_limit - (8 << 20), 8 << 20)

    c_lane = max(_round_up(C, 128), 128)
    bt = _choose_bt(B, r_pad, s_pad, c_lane, 2 * hid_pad, 2 * c_pad, budget)
    B_pad = _round_up(B, bt)                 # handle non-divisor batch counts

    # Row-pad only to r_pad (multiple of 8) and cast to bf16; the 128-wide
    # k-side padding is synthesized inside the kernel.
    x = jnp.zeros((B_pad, r_pad, C), jnp.bfloat16)
    x = x.at[:B, :S, :].set(padded_hidden.astype(jnp.bfloat16))

    kernel = functools.partial(
        _instance_head_kernel, bt=bt, r_pad=r_pad, s_pad=s_pad,
        hid=hid, hid_pad=hid_pad, c_pad=c_pad)

    out = pl.pallas_call(
        kernel,
        out_shape=jax.ShapeDtypeStruct((B_pad, r_pad, s_pad), out_dtype),
        grid_spec=pltpu.PrefetchScalarGridSpec(
            num_scalar_prefetch=0,
            grid=(B_pad // bt,),
            in_specs=[
                pl.BlockSpec((bt, r_pad, C), lambda b: (b, 0, 0)),
                pl.BlockSpec(w1.shape, lambda b: (0, 0)),
                pl.BlockSpec(w2.shape, lambda b: (0, 0)),
                pl.BlockSpec(vec.shape, lambda b: (0, 0)),
            ],
            out_specs=pl.BlockSpec((bt, r_pad, s_pad), lambda b: (b, 0, 0)),
        ),
        compiler_params=pltpu.CompilerParams(
            dimension_semantics=("parallel",),
            vmem_limit_bytes=int(vmem_limit),
        ),
    )(x, w1, w2, vec)

    # Padded rows/cols (>= S) never influence the valid region; slice them off.
    return out[:B, :S, :S].astype(jnp.float32)


# ----------------------------------------------------------------------------
# Glue (plain JAX): scatter_mean + split/pad_sequence
# ----------------------------------------------------------------------------
def scatter_mean(x, index, num_segments):
    sums = jax.ops.segment_sum(x, index, num_segments=num_segments)
    cnts = jax.ops.segment_sum(jnp.ones((x.shape[0], 1), x.dtype), index,
                               num_segments=num_segments)
    return sums / jnp.maximum(cnts, 1.0)


def pad_by_batch(node_feats, batch_num_nodes):
    """Equivalent of torch.split + pad_sequence(batch_first=True)."""
    B = len(batch_num_nodes)
    S = max(batch_num_nodes)
    C = node_feats.shape[1]
    padded = jnp.zeros((B, S, C), node_feats.dtype)
    off = 0
    for b, n in enumerate(batch_num_nodes):
        padded = padded.at[b, :n, :].set(node_feats[off:off + n])
        off += n
    return padded


# ----------------------------------------------------------------------------
# Parameter init + packing
# ----------------------------------------------------------------------------
def init_params(key, in_channels, out_channels):
    hid = in_channels * 2
    keys = jax.random.split(key, 8)

    def lin(k, fan_in, fan_out):
        bound = 1.0 / np.sqrt(fan_in)
        w = jax.random.uniform(k, (fan_in, fan_out), jnp.float32, -bound, bound)
        b = jax.random.uniform(jax.random.fold_in(k, 1), (fan_out,),
                               jnp.float32, -bound, bound)
        return w, b

    w1q, b1q = lin(keys[0], in_channels, hid)
    w2q, b2q = lin(keys[1], hid, out_channels)
    w1k, b1k = lin(keys[2], in_channels, hid)
    w2k, b2k = lin(keys[3], hid, out_channels)
    return {
        "w1q": w1q, "b1q": b1q,
        "gq": jnp.ones((hid,), jnp.float32), "betaq": jnp.zeros((hid,), jnp.float32),
        "w2q": w2q, "b2q": b2q,
        "w1k": w1k, "b1k": b1k,
        "gk": jnp.ones((hid,), jnp.float32), "betak": jnp.zeros((hid,), jnp.float32),
        "w2k": w2k, "b2k": b2k,
    }


def pack_params(p, in_channels, out_channels):
    """Pack the 12 small arrays into 3 lane-padded slabs (few, wide DMAs)."""
    hid = 2 * in_channels
    hid_pad = _round_up(hid, 128)
    c_pad = _round_up(out_channels, 128)
    slab_w = max(2 * hid_pad, 2 * c_pad)

    w1 = jnp.zeros((in_channels, 2 * hid_pad), jnp.float32)
    w1 = w1.at[:, :hid].set(p["w1q"])
    w1 = w1.at[:, hid_pad:hid_pad + hid].set(p["w1k"])

    # Block-diagonal second layer: one fused matmul, no lane-offset slices.
    w2 = jnp.zeros((2 * hid_pad, 2 * c_pad), jnp.float32)
    w2 = w2.at[:hid, :out_channels].set(p["w2q"])
    w2 = w2.at[hid_pad:hid_pad + hid, c_pad:c_pad + out_channels].set(p["w2k"])

    vec = jnp.zeros((8, slab_w), jnp.float32)
    vec = vec.at[0, :hid].set(p["b1q"]).at[0, hid_pad:hid_pad + hid].set(p["b1k"])
    vec = vec.at[1, :hid].set(p["gq"]).at[1, hid_pad:hid_pad + hid].set(p["gk"])
    vec = vec.at[2, :hid].set(p["betaq"]).at[2, hid_pad:hid_pad + hid].set(p["betak"])
    vec = vec.at[3, :out_channels].set(p["b2q"]).at[3, c_pad:c_pad + out_channels].set(p["b2k"])

    return {"w1": w1.astype(jnp.bfloat16), "w2": w2.astype(jnp.bfloat16),
            "vec": vec, "hid": hid, "hid_pad": hid_pad,
            "c_out": out_channels, "c_pad": c_pad}


# ----------------------------------------------------------------------------
# Pure-f32 reference from the UNPACKED params (non-circular check):
# Linear -> two-pass LayerNorm -> ReLU -> (Dropout=id) -> Linear, then bmm.
# ----------------------------------------------------------------------------
def reference_forward(padded, params):
    def mlp(x, w1, b1, g, beta, w2, b2):
        h = jnp.dot(x, w1) + b1
        mu = h.mean(-1, keepdims=True)
        var = ((h - mu) ** 2).mean(-1, keepdims=True)
        hn = (h - mu) / jnp.sqrt(var + LN_EPS) * g + beta
        hn = jnp.maximum(hn, 0.0)
        return jnp.dot(hn, w2) + b2

    q = mlp(padded, params["w1q"], params["b1q"], params["gq"], params["betaq"],
            params["w2q"], params["b2q"])
    k = mlp(padded, params["w1k"], params["b1k"], params["gk"], params["betak"],
            params["w2k"], params["b2k"])
    return jnp.einsum("bsc,btc->bst", q, k)


if __name__ == "__main__":
    key = jax.random.PRNGKey(0)
    k_x, k_assign, k_params = jax.random.split(key, 3)

    in_channels = 32
    out_channels = 16
    n_points = 64
    batch_num_nodes = [5, 8]                 # nodes per graph (static for harness)
    total_nodes = sum(batch_num_nodes)

    # per-point features and point -> node assignment (f_point_batches)
    x_points = jax.random.normal(k_x, (n_points, in_channels), jnp.float32)
    f_point_batches = jax.random.randint(k_assign, (n_points,), 0, total_nodes)
    g_node_batches = jnp.array(
        sum(([b] * n for b, n in enumerate(batch_num_nodes)), []), jnp.int32)
    _ = g_node_batches  # its unique-counts == batch_num_nodes by construction

    params = init_params(k_params, in_channels, out_channels)
    packed = pack_params(params, in_channels, out_channels)

    # forward: scatter_mean -> split/pad -> Pallas (fused MLP_q/MLP_k + bmm)
    node_feats = scatter_mean(x_points, f_point_batches, total_nodes)
    padded_hidden = pad_by_batch(node_feats, batch_num_nodes)   # [B, S, C_in]

    inst_out = instance_head_pallas(padded_hidden, packed)      # [B, S, S]
    inst_out = jax.block_until_ready(inst_out)

    ref = reference_forward(padded_hidden, params)
    # bf16 MXU operands in the kernel vs pure-f32 reference -> loose tolerance.
    np.testing.assert_allclose(np.asarray(inst_out), np.asarray(ref),
                               rtol=5e-2, atol=5e-2)
    print("KERNEL_OK")
</pallas_src>

<mosaic_0001>
module attributes {stable_mosaic.version = 11 : i64} {
  func.func @_instance_head_kernel(%arg0: i32, %arg1: memref<1x8x32xbf16, #tpu.memory_space<vmem>>, %arg2: memref<32x256xbf16, #tpu.memory_space<vmem>>, %arg3: memref<256x256xbf16, #tpu.memory_space<vmem>>, %arg4: memref<8x256xf32, #tpu.memory_space<vmem>>, %arg5: memref<1x8x128xf32, #tpu.memory_space<vmem>>) attributes {dimension_semantics = [#tpu.dimension_semantics<parallel>], iteration_bounds = array<i64: 2>, scalar_prefetch = 0 : i64, scratch_operands = 0 : i64, tpu.core_type = #tpu.core_type<tc>, window_params = [{transform_indices = @transform_0, window_bounds = array<i64: 1, 8, 32>}, {pipeline_mode = #tpu.pipeline_mode<synchronous>, transform_indices = @transform_1, window_bounds = array<i64: 32, 256>}, {pipeline_mode = #tpu.pipeline_mode<synchronous>, transform_indices = @transform_2, window_bounds = array<i64: 256, 256>}, {pipeline_mode = #tpu.pipeline_mode<synchronous>, transform_indices = @transform_3, window_bounds = array<i64: 8, 256>}, {transform_indices = @transform_4, window_bounds = array<i64: 1, 8, 128>}]} {
    %c0 = arith.constant 0 : index
    %c0_0 = arith.constant 0 : index
    %c0_1 = arith.constant 0 : index
    %0 = vector.load %arg1[%c0, %c0_0, %c0_1] : memref<1x8x32xbf16, #tpu.memory_space<vmem>>, vector<1x8x32xbf16>
    %1 = vector.shape_cast %0 : vector<1x8x32xbf16> to vector<8x32xbf16>
    %c0_2 = arith.constant 0 : index
    %c0_3 = arith.constant 0 : index
    %2 = vector.load %arg4[%c0_2, %c0_3] : memref<8x256xf32, #tpu.memory_space<vmem>>, vector<8x256xf32>
    %c0_4 = arith.constant 0 : index
    %c0_5 = arith.constant 0 : index
    %3 = vector.load %arg2[%c0_4, %c0_5] : memref<32x256xbf16, #tpu.memory_space<vmem>>, vector<32x256xbf16>
    %cst = arith.constant dense<0.000000e+00> : vector<8x256xf32>
    %4 = tpu.matmul %1, %3, %cst {dimension_numbers = #tpu.dot_dimension_numbers<[1], [0], [0], [1], [0, 0, 1, 1], [], []>} : vector<8x32xbf16>, vector<32x256xbf16>, vector<8x256xf32> -> vector<8x256xf32>
    %5 = vector.extract_strided_slice %2 {offsets = [0, 0], sizes = [1, 256], strides = [1, 1]} : vector<8x256xf32> to vector<1x256xf32>
    %6 = vector.broadcast %5 : vector<1x256xf32> to vector<8x256xf32>
    %7 = arith.addf %4, %6 : vector<8x256xf32>
    %8 = tpu.iota {dimensions = array<i32: 1>} : vector<1x128xi32>
    %c64_i32 = arith.constant 64 : i32
    %9 = vector.broadcast %c64_i32 : i32 to vector<1x128xi32>
    %10 = arith.cmpi slt, %8, %9 : vector<1x128xi32>
    %11 = arith.extui %10 : vector<1x128xi1> to vector<1x128xi32>
    %12 = arith.sitofp %11 : vector<1x128xi32> to vector<1x128xf32>
    %13 = vector.extract_strided_slice %2 {offsets = [1, 0], sizes = [1, 256], strides = [1, 1]} : vector<8x256xf32> to vector<1x256xf32>
    %14 = vector.extract_strided_slice %2 {offsets = [2, 0], sizes = [1, 256], strides = [1, 1]} : vector<8x256xf32> to vector<1x256xf32>
    %15 = vector.extract_strided_slice %7 {offsets = [0, 0], sizes = [8, 128], strides = [1, 1]} : vector<8x256xf32> to vector<8x128xf32>
    %16 = vector.extract_strided_slice %13 {offsets = [0, 0], sizes = [1, 128], strides = [1, 1]} : vector<1x256xf32> to vector<1x128xf32>
    %17 = vector.extract_strided_slice %14 {offsets = [0, 0], sizes = [1, 128], strides = [1, 1]} : vector<1x256xf32> to vector<1x128xf32>
    %cst_6 = arith.constant dense<0.000000e+00> : vector<8xf32>
    %18 = vector.multi_reduction <add>, %15, %cst_6 [1] : vector<8x128xf32> to vector<8xf32>
    %19 = vector.shape_cast %18 : vector<8xf32> to vector<8x1xf32>
    %cst_7 = arith.constant 1.562500e-02 : f32
    %20 = vector.broadcast %cst_7 : f32 to vector<8x1xf32>
    %21 = arith.mulf %19, %20 : vector<8x1xf32>
    %22 = vector.broadcast %21 : vector<8x1xf32> to vector<8x128xf32>
    %23 = arith.subf %15, %22 : vector<8x128xf32>
    %24 = vector.broadcast %12 : vector<1x128xf32> to vector<8x128xf32>
    %25 = arith.mulf %23, %24 : vector<8x128xf32>
    %26 = arith.mulf %25, %25 : vector<8x128xf32>
    %cst_8 = arith.constant dense<0.000000e+00> : vector<8xf32>
    %27 = vector.multi_reduction <add>, %26, %cst_8 [1] : vector<8x128xf32> to vector<8xf32>
    %28 = vector.shape_cast %27 : vector<8xf32> to vector<8x1xf32>
    %cst_9 = arith.constant 1.562500e-02 : f32
    %29 = vector.broadcast %cst_9 : f32 to vector<8x1xf32>
    %30 = arith.mulf %28, %29 : vector<8x1xf32>
    %cst_10 = arith.constant 9.99999974E-6 : f32
    %31 = vector.broadcast %cst_10 : f32 to vector<8x1xf32>
    %32 = arith.addf %30, %31 : vector<8x1xf32>
    %33 = math.rsqrt %32 : vector<8x1xf32>
    %34 = vector.broadcast %33 : vector<8x1xf32> to vector<8x128xf32>
    %35 = arith.mulf %25, %34 : vector<8x128xf32>
    %36 = vector.broadcast %16 : vector<1x128xf32> to vector<8x128xf32>
    %37 = arith.mulf %35, %36 : vector<8x128xf32>
    %38 = vector.broadcast %17 : vector<1x128xf32> to vector<8x128xf32>
    %39 = arith.addf %37, %38 : vector<8x128xf32>
    %cst_11 = arith.constant 0.000000e+00 : f32
    %40 = vector.broadcast %cst_11 : f32 to vector<8x128xf32>
    %41 = arith.maximumf %39, %40 : vector<8x128xf32>
    %42 = vector.extract_strided_slice %7 {offsets = [0, 128], sizes = [8, 128], strides = [1, 1]} : vector<8x256xf32> to vector<8x128xf32>
    %43 = vector.extract_strided_slice %13 {offsets = [0, 128], sizes = [1, 128], strides = [1, 1]} : vector<1x256xf32> to vector<1x128xf32>
    %44 = vector.extract_strided_slice %14 {offsets = [0, 128], sizes = [1, 128], strides = [1, 1]} : vector<1x256xf32> to vector<1x128xf32>
    %cst_12 = arith.constant dense<0.000000e+00> : vector<8xf32>
    %45 = vector.multi_reduction <add>, %42, %cst_12 [1] : vector<8x128xf32> to vector<8xf32>
    %46 = vector.shape_cast %45 : vector<8xf32> to vector<8x1xf32>
    %cst_13 = arith.constant 1.562500e-02 : f32
    %47 = vector.broadcast %cst_13 : f32 to vector<8x1xf32>
    %48 = arith.mulf %46, %47 : vector<8x1xf32>
    %49 = vector.broadcast %48 : vector<8x1xf32> to vector<8x128xf32>
    %50 = arith.subf %42, %49 : vector<8x128xf32>
    %51 = vector.broadcast %12 : vector<1x128xf32> to vector<8x128xf32>
    %52 = arith.mulf %50, %51 : vector<8x128xf32>
    %53 = arith.mulf %52, %52 : vector<8x128xf32>
    %cst_14 = arith.constant dense<0.000000e+00> : vector<8xf32>
    %54 = vector.multi_reduction <add>, %53, %cst_14 [1] : vector<8x128xf32> to vector<8xf32>
    %55 = vector.shape_cast %54 : vector<8xf32> to vector<8x1xf32>
    %cst_15 = arith.constant 1.562500e-02 : f32
    %56 = vector.broadcast %cst_15 : f32 to vector<8x1xf32>
    %57 = arith.mulf %55, %56 : vector<8x1xf32>
    %cst_16 = arith.constant 9.99999974E-6 : f32
    %58 = vector.broadcast %cst_16 : f32 to vector<8x1xf32>
    %59 = arith.addf %57, %58 : vector<8x1xf32>
    %60 = math.rsqrt %59 : vector<8x1xf32>
    %61 = vector.broadcast %60 : vector<8x1xf32> to vector<8x128xf32>
    %62 = arith.mulf %52, %61 : vector<8x128xf32>
    %63 = vector.broadcast %43 : vector<1x128xf32> to vector<8x128xf32>
    %64 = arith.mulf %62, %63 : vector<8x128xf32>
    %65 = vector.broadcast %44 : vector<1x128xf32> to vector<8x128xf32>
    %66 = arith.addf %64, %65 : vector<8x128xf32>
    %cst_17 = arith.constant 0.000000e+00 : f32
    %67 = vector.broadcast %cst_17 : f32 to vector<8x128xf32>
    %68 = arith.maximumf %66, %67 : vector<8x128xf32>
    %69 = tpu.concatenate %41, %68 in 1 : vector<8x128xf32>, vector<8x128xf32> -> vector<8x256xf32>
    %70 = arith.truncf %69 : vector<8x256xf32> to vector<8x256xbf16>
    %c0_18 = arith.constant 0 : index
    %c0_19 = arith.constant 0 : index
    %71 = vector.load %arg3[%c0_18, %c0_19] : memref<256x256xbf16, #tpu.memory_space<vmem>>, vector<256x256xbf16>
    %cst_20 = arith.constant dense<0.000000e+00> : vector<8x256xf32>
    %72 = tpu.matmul %70, %71, %cst_20 {dimension_numbers = #tpu.dot_dimension_numbers<[1], [0], [0], [1], [0, 0, 1, 1], [], []>} : vector<8x256xbf16>, vector<256x256xbf16>, vector<8x256xf32> -> vector<8x256xf32>
    %73 = vector.extract_strided_slice %2 {offsets = [3, 0], sizes = [1, 256], strides = [1, 1]} : vector<8x256xf32> to vector<1x256xf32>
    %74 = vector.broadcast %73 : vector<1x256xf32> to vector<8x256xf32>
    %75 = arith.addf %72, %74 : vector<8x256xf32>
    %76 = vector.extract_strided_slice %75 {offsets = [0, 0], sizes = [8, 128], strides = [1, 1]} : vector<8x256xf32> to vector<8x128xf32>
    %77 = vector.shape_cast %76 : vector<8x128xf32> to vector<1x8x128xf32>
    %78 = arith.truncf %77 : vector<1x8x128xf32> to vector<1x8x128xbf16>
    %79 = vector.extract_strided_slice %75 {offsets = [0, 128], sizes = [8, 128], strides = [1, 1]} : vector<8x256xf32> to vector<8x128xf32>
    %80 = vector.shape_cast %79 : vector<8x128xf32> to vector<1x8x128xf32>
    %81 = arith.truncf %80 : vector<1x8x128xf32> to vector<1x8x128xbf16>
    %cst_21 = arith.constant 0.000000e+00 : bf16
    %82 = vector.broadcast %cst_21 : bf16 to vector<1x120x128xbf16>
    %83 = tpu.concatenate %81, %82 in 1 : vector<1x8x128xbf16>, vector<1x120x128xbf16> -> vector<1x128x128xbf16>
    %cst_22 = arith.constant dense<0.000000e+00> : vector<1x8x128xf32>
    %84 = tpu.matmul %78, %83, %cst_22 {dimension_numbers = #tpu.dot_dimension_numbers<[2], [2], [1], [1], [0, 0, 0, 1, 1, 1], [0], [0]>} : vector<1x8x128xbf16>, vector<1x128x128xbf16>, vector<1x8x128xf32> -> vector<1x8x128xf32>
    %c0_23 = arith.constant 0 : index
    %c0_24 = arith.constant 0 : index
    %c0_25 = arith.constant 0 : index
    %85 = vector.load %arg5[%c0_23, %c0_24, %c0_25] : memref<1x8x128xf32, #tpu.memory_space<vmem>>, vector<1x8x128xf32>
    tpu.vector_store %arg5[%c0_23, %c0_24, %c0_25], %84 {strides = array<i32>} : memref<1x8x128xf32, #tpu.memory_space<vmem>>, vector<1x8x128xf32>,
    return
  }
  func.func @transform_0(%arg0: i32) -> (i32, i32, i32) {
    %c0_i32 = arith.constant 0 : i32
    %c0_i32_0 = arith.constant 0 : i32
    %c0_i32_1 = arith.constant 0 : i32
    return %arg0, %c0_i32, %c0_i32_0 : i32, i32, i32
  }
  func.func @transform_1(%arg0: i32) -> (i32, i32) {
    %c0_i32 = arith.constant 0 : i32
    %c0_i32_0 = arith.constant 0 : i32
    %c0_i32_1 = arith.constant 0 : i32
    return %c0_i32, %c0_i32_0 : i32, i32
  }
  func.func @transform_2(%arg0: i32) -> (i32, i32) {
    %c0_i32 = arith.constant 0 : i32
    %c0_i32_0 = arith.constant 0 : i32
    %c0_i32_1 = arith.constant 0 : i32
    return %c0_i32, %c0_i32_0 : i32, i32
  }
  func.func @transform_3(%arg0: i32) -> (i32, i32) {
    %c0_i32 = arith.constant 0 : i32
    %c0_i32_0 = arith.constant 0 : i32
    %c0_i32_1 = arith.constant 0 : i32
    return %c0_i32, %c0_i32_0 : i32, i32
  }
  func.func @transform_4(%arg0: i32) -> (i32, i32, i32) {
    %c0_i32 = arith.constant 0 : i32
    %c0_i32_0 = arith.constant 0 : i32
    %c0_i32_1 = arith.constant 0 : i32
    return %arg0, %c0_i32, %c0_i32_0 : i32, i32, i32
  }
}

</mosaic_0001>

<llo_original>
// kernel: tpu_custom_call.1
$region0: #{tpu_custom_call.1}
  #allocation0 [shape = 'u32[]', space=smem, size = 0x4, offset = 0x4, fixed_abs, tag = 'smem constant byte address 0x4 - core index']
  #allocation1 [shape = 'u32[144,128]{1,0:T(1,128)}', space=vmem, size = 0x12000, scoped, tag = 'internal scratch']
  %s0 = inlined_call_operand.hbm [shape: bf16[2,8,32], index: 0, kind: input, shape index: {}]
  %s1 = inlined_call_operand.hbm [shape: bf16[32,256], index: 1, kind: input, shape index: {}]
  %s2 = inlined_call_operand.hbm [shape: bf16[256,256], index: 2, kind: input, shape index: {}]
  %s3 = inlined_call_operand.hbm [shape: f32[8,256], index: 3, kind: input, shape index: {}]
  %s4 = inlined_call_operand.hbm [shape: f32[2,8,128], index: 4, kind: output, shape index: {}]
  %s5 = sld [smem:[#allocation0]]
  $region65: #{tpu_custom_call.1} parent=0
    _
  %s7 = ssub.s32 1, %s5
  %s8 = scalar_select 0, %s7, %s5
  $region1: #{tpu_custom_call.1} parent=0
    #allocation2 [shape = 'u8[4096]{0}', space=vmem, size = 0x1000, scoped, tag = 'input window, operand 0']
    #allocation3 [shape = 's32[2]{0}', space=sflag, size = 0x8, scoped, tag = 'scoped memory for tpu_custom_call.1']
    #allocation4 [shape = 's32[2]{0}', space=sflag, size = 0x8, scoped, tag = 'scoped memory for tpu_custom_call.1']
    #allocation5 [shape = 'u8[16384]{0}', space=vmem, size = 0x4000, scoped, tag = 'input window, operand 1, single buffered']
    #allocation6 [shape = 's32[1]{0}', space=sflag, size = 0x4, scoped, tag = 'scoped memory for tpu_custom_call.1']
    #allocation7 [shape = 'u8[131072]{0}', space=vmem, size = 0x20000, scoped, tag = 'input window, operand 2, single buffered']
    #allocation8 [shape = 'u8[8192]{0}', space=vmem, size = 0x2000, scoped, tag = 'input window, operand 3, single buffered']
    #allocation9 [shape = 's32[1]{0}', space=sflag, size = 0x4, scoped, tag = 'scoped memory for tpu_custom_call.1']
    #allocation10 [shape = 'u8[8192]{0}', space=vmem, size = 0x2000, scoped, tag = 'output window, operand 0']
    %9 = vsyncpa [#allocation3], 0
    %s10 = scalar_lea.sflag [#allocation3], 1
    %11 = vsyncpa %s10, 0
    %12 = vsyncpa [#allocation6], 0
    %13 = vsyncpa [#allocation9], 0
    %14 = vsyncpa [#allocation4], 0
    %s15 = scalar_lea.sflag [#allocation4], 1
    %16 = vsyncpa %s15, 0
    loop: start=0, step=1, limit=4
    $region2: #{tpu_custom_call.1} parent=1 // loop_pre_header
      _
    $region3: #{tpu_custom_call.1} parent=1 // loop_header
      %s18 = sphi 0, %s22
      %p19 = scmp.ge.s32.totalorder %s18, 4
      %s28 = sphi 0, %s30
      %s31 = sphi 0, %s28
      %s32 = sphi 0, %s31
      %s48 = sphi 0, %s32
      %s52 = sphi 0, %s52
      %s54 = sphi 0, %s52
      %s55 = sphi 0, %s54
      %s69 = sphi 0, %s55
      %s73 = sphi 0, %s73
      %s75 = sphi 0, %s73
      %s76 = sphi 0, %s75
      %s90 = sphi 0, %s76
      %s94 = sphi 0, %s94
      %s96 = sphi 0, %s94
      %s97 = sphi 0, %s96
      %s111 = sphi 0, %s97
      %s117 = sphi 0, %s119
      %s120 = sphi 0, %s117
      %s121 = sphi 0, %s120
      %s137 = sphi 0, %s121
    $region4: #{tpu_custom_call.1} parent=1 // loop_header_branch
      %21 = sbr.rel (%p19) target = $region8
    $region5: #{tpu_custom_call.1} parent=1 // loop_body
      %s23 = ssub.s32 %s18, 1
      %s24 = ssub.s32 %s18, 2
      %s25 = sadd.s32 %s18, 1
      %s26 = ssub.s32 %s18, %s25
      %p27 = scmp.eq.s32.totalorder %s26, 0
      %s29 = sadd.s32 %s28, 1
      %s30 = scalar_select %p27, %s28, %s29
      %p33 = pneg %p27
      %p34 = scmp.eq.s32.totalorder %s18, 1
      %p35 = por %p33, %p34
      %p36 = scmp.ne.s32.totalorder %s28, %s31
      %p37 = scmp.eq.s32.totalorder %s18, 0
      %p38 = por %p36, %p37
      %p39 = scmp.ne.s32.totalorder %s28, %s31
      %p40 = scmp.eq.s32.totalorder %s23, 1
      %p41 = por %p39, %p40
      %p42 = scmp.ne.s32.totalorder %s31, %s32
      %p43 = scmp.eq.s32.totalorder %s23, 0
      %p44 = por %p42, %p43
      %p45 = scmp.ne.s32.totalorder %s31, %s32
      %p46 = scmp.eq.s32.totalorder %s24, 1
      %p47 = por %p45, %p46
      %p49 = scmp.ne.s32.totalorder %s32, %s48
      %p50 = scmp.eq.s32.totalorder %s24, 0
      %p51 = por %p49, %p50
      %s53 = sadd.s32 %s52, 1
      %p56 = scmp.eq.s32.totalorder %s18, 1
      %p57 = scmp.ne.s32.totalorder %s52, %s54
      %p58 = scmp.eq.s32.totalorder %s18, 0
      %p59 = por %p57, %p58
      %p60 = scmp.ne.s32.totalorder %s52, %s54
      %p61 = scmp.eq.s32.totalorder %s23, 1
      %p62 = por %p60, %p61
      %p63 = scmp.ne.s32.totalorder %s54, %s55
      %p64 = scmp.eq.s32.totalorder %s23, 0
      %p65 = por %p63, %p64
      %p66 = scmp.ne.s32.totalorder %s54, %s55
      %p67 = scmp.eq.s32.totalorder %s24, 1
      %p68 = por %p66, %p67
      %p70 = scmp.ne.s32.totalorder %s55, %s69
      %p71 = scmp.eq.s32.totalorder %s24, 0
      %p72 = por %p70, %p71
      %s74 = sadd.s32 %s73, 1
      %p77 = scmp.eq.s32.totalorder %s18, 1
      %p78 = scmp.ne.s32.totalorder %s73, %s75
      %p79 = scmp.eq.s32.totalorder %s18, 0
      %p80 = por %p78, %p79
      %p81 = scmp.ne.s32.totalorder %s73, %s75
      %p82 = scmp.eq.s32.totalorder %s23, 1
      %p83 = por %p81, %p82
      %p84 = scmp.ne.s32.totalorder %s75, %s76
      %p85 = scmp.eq.s32.totalorder %s23, 0
      %p86 = por %p84, %p85
      %p87 = scmp.ne.s32.totalorder %s75, %s76
      %p88 = scmp.eq.s32.totalorder %s24, 1
      %p89 = por %p87, %p88
      %p91 = scmp.ne.s32.totalorder %s76, %s90
      %p92 = scmp.eq.s32.totalorder %s24, 0
      %p93 = por %p91, %p92
      %s95 = sadd.s32 %s94, 1
      %p98 = scmp.eq.s32.totalorder %s18, 1
      %p99 = scmp.ne.s32.totalorder %s94, %s96
      %p100 = scmp.eq.s32.totalorder %s18, 0
      %p101 = por %p99, %p100
      %p102 = scmp.ne.s32.totalorder %s94, %s96
      %p103 = scmp.eq.s32.totalorder %s23, 1
      %p104 = por %p102, %p103
      %p105 = scmp.ne.s32.totalorder %s96, %s97
      %p106 = scmp.eq.s32.totalorder %s23, 0
      %p107 = por %p105, %p106
      %p108 = scmp.ne.s32.totalorder %s96, %s97
      %p109 = scmp.eq.s32.totalorder %s24, 1
      %p110 = por %p108, %p109
      %p112 = scmp.ne.s32.totalorder %s97, %s111
      %p113 = scmp.eq.s32.totalorder %s24, 0
      %p114 = por %p112, %p113
      %s115 = ssub.s32 %s18, %s25
      %p116 = scmp.eq.s32.totalorder %s115, 0
      %s118 = sadd.s32 %s117, 1
      %s119 = scalar_select %p116, %s117, %s118
      %p122 = pneg %p116
      %p123 = scmp.eq.s32.totalorder %s18, 1
      %p124 = por %p122, %p123
      %p125 = scmp.ne.s32.totalorder %s117, %s120
      %p126 = scmp.eq.s32.totalorder %s18, 0
      %p127 = por %p125, %p126
      %p128 = scmp.ne.s32.totalorder %s117, %s120
      %p129 = scmp.eq.s32.totalorder %s23, 1
      %p130 = por %p128, %p129
      %p131 = scmp.ne.s32.totalorder %s120, %s121
      %p132 = scmp.eq.s32.totalorder %s23, 0
      %p133 = por %p131, %p132
      %p134 = scmp.ne.s32.totalorder %s120, %s121
      %p135 = scmp.eq.s32.totalorder %s24, 1
      %p136 = por %p134, %p135
      %p138 = scmp.ne.s32.totalorder %s121, %s137
      %p139 = scmp.eq.s32.totalorder %s24, 0
      %p140 = por %p138, %p139
      %p141 = scmp.le.s32.totalorder 1, %s18
      %p142 = scmp.lt.s32.totalorder %s18, 3
      %p143 = pnand %p141, %p142
      %p144 = pneg %p143
      // Predicated region
      $region9: #{tpu_custom_call.1} parent=5 // pred_check
        _
      $region10: #{tpu_custom_call.1} parent=5 // pred_check_branch
        %146 = sbr.rel (%p143) target = $region12
      $region11: #{tpu_custom_call.1} parent=5 // pred_region
        %s147 = ssub.s32 %s18, 1
        // Predicated region
        $region13: #{tpu_custom_call.1} parent=11 // pred_check
          %p148 = pneg %p65
        $region14: #{tpu_custom_call.1} parent=11 // pred_check_branch
          %150 = sbr.rel (%p148) target = $region16
        $region15: #{tpu_custom_call.1} parent=11 // pred_region
          %s152 = ssub.s32 512, 512
          %153 = vsyncadd [#allocation6], %s152
          %s154 = sshll.u32 [#allocation5], 4
          %s155 = int_to_ptr.vmem [resolvable:$true] %s154
          %160 = dma.hbm_to_vmem [thread:$0]  %s1, 512, %s155, [#allocation6], 128, 128, 8
        $region16: #{tpu_custom_call.1} parent=11 // pred_fallthru
          _
        // Predicated region
        $region17: #{tpu_custom_call.1} parent=11 // pred_check
          %p161 = pneg %p86
        $region18: #{tpu_custom_call.1} parent=11 // pred_check_branch
          %163 = sbr.rel (%p161) target = $region20
        $region19: #{tpu_custom_call.1} parent=11 // pred_region
          %s165 = ssub.s32 4096, 4096
          %166 = vsyncadd [#allocation6], %s165
          %s167 = sshll.u32 [#allocation7], 4
          %s168 = int_to_ptr.vmem [resolvable:$true] %s167
          %173 = dma.hbm_to_vmem [thread:$0]  %s2, 4096, %s168, [#allocation6], 128, 128, 8
        $region20: #{tpu_custom_call.1} parent=11 // pred_fallthru
          _
        // Predicated region
        $region21: #{tpu_custom_call.1} parent=11 // pred_check
          %p174 = pneg %p107
        $region22: #{tpu_custom_call.1} parent=11 // pred_check_branch
          %176 = sbr.rel (%p174) target = $region24
        $region23: #{tpu_custom_call.1} parent=11 // pred_region
          %s178 = ssub.s32 256, 256
          %179 = vsyncadd [#allocation9], %s178
          %s181 = sshll.u32 [#allocation8], 4
          %s182 = int_to_ptr.vmem [resolvable:$true] %s181
          %184 = dma.hbm_to_vmem [thread:$0]  %s3, 256, %s182, [#allocation9]
        $region24: #{tpu_custom_call.1} parent=11 // pred_fallthru
          _
      $region12: #{tpu_custom_call.1} parent=5 // pred_fallthru
        _
      %p185 = scmp.lt.s32.totalorder %s18, 2
      // Predicated region
      $region25: #{tpu_custom_call.1} parent=5 // pred_check
        %p186 = pneg %p185
      $region26: #{tpu_custom_call.1} parent=5 // pred_check_branch
        %188 = sbr.rel (%p186) target = $region28
      $region27: #{tpu_custom_call.1} parent=5 // pred_region
        // Predicated region
        $region29: #{tpu_custom_call.1} parent=27 // pred_check
          %p189 = pneg %p38
        $region30: #{tpu_custom_call.1} parent=27 // pred_check_branch
          %191 = sbr.rel (%p189) target = $region32
        $region31: #{tpu_custom_call.1} parent=27 // pred_region
          %s192 = sand.u32 %s28, 1
          %s193 = scalar_lea.sflag [#allocation3], %s192
          %s194 = sand.u32 %s28, 1
          %s195 = smul.addr %s194, 4
          %s196 = scalar_lea.vmem [#allocation2], %s195
          %s198 = ssub.s32 64, 64
          %199 = vsyncadd %s193, %s198
          %s200 = smul.addr %s18, 64
          %s201 = scalar_lea.hbm %s0, %s200
          %s203 = sshll.u32 %s196, 4
          %s204 = int_to_ptr.vmem [resolvable:$true] %s203
          %206 = dma.hbm_to_vmem [thread:$0]  %s201, 64, %s204, %s193
        $region32: #{tpu_custom_call.1} parent=27 // pred_fallthru
          _
      $region28: #{tpu_custom_call.1} parent=5 // pred_fallthru
        _
      %p207 = scmp.le.s32.totalorder 1, %s18
      %p208 = scmp.lt.s32.totalorder %s18, 3
      %p209 = pnand %p207, %p208
      %p210 = pneg %p209
      // Predicated region
      $region33: #{tpu_custom_call.1} parent=5 // pred_check
        _
      $region34: #{tpu_custom_call.1} parent=5 // pred_check_branch
        %212 = sbr.rel (%p209) target = $region36
      $region35: #{tpu_custom_call.1} parent=5 // pred_region
        %s213 = ssub.s32 %s18, 1
        %s214 = sand.u32 %s31, 1
        %s215 = scalar_lea.sflag [#allocation3], %s214
        %s216 = sand.u32 %s31, 1
        %s217 = smul.addr %s216, 4
        %s218 = scalar_lea.vmem [#allocation2], %s217
        // Predicated region
        $region37: #{tpu_custom_call.1} parent=35 // pred_check
          %p219 = pneg %p44
        $region38: #{tpu_custom_call.1} parent=35 // pred_check_branch
          %221 = sbr.rel (%p219) target = $region40
        $region39: #{tpu_custom_call.1} parent=35 // pred_region
          %222 = dma.done %s215, 64
        $region40: #{tpu_custom_call.1} parent=35 // pred_fallthru
          _
        // Predicated region
        $region41: #{tpu_custom_call.1} parent=35 // pred_check
          %p223 = pneg %p65
        $region42: #{tpu_custom_call.1} parent=35 // pred_check_branch
          %225 = sbr.rel (%p223) target = $region44
        $region43: #{tpu_custom_call.1} parent=35 // pred_region
          %226 = dma.done [#allocation6], 512
        $region44: #{tpu_custom_call.1} parent=35 // pred_fallthru
          _
        // Predicated region
        $region45: #{tpu_custom_call.1} parent=35 // pred_check
          %p227 = pneg %p86
        $region46: #{tpu_custom_call.1} parent=35 // pred_check_branch
          %229 = sbr.rel (%p227) target = $region48
        $region47: #{tpu_custom_call.1} parent=35 // pred_region
          %230 = dma.done [#allocation6], 4096
        $region48: #{tpu_custom_call.1} parent=35 // pred_fallthru
          _
        // Predicated region
        $region49: #{tpu_custom_call.1} parent=35 // pred_check
          %p231 = pneg %p107
        $region50: #{tpu_custom_call.1} parent=35 // pred_check_branch
          %233 = sbr.rel (%p231) target = $region52
        $region51: #{tpu_custom_call.1} parent=35 // pred_region
          %234 = dma.done [#allocation9], 256
        $region52: #{tpu_custom_call.1} parent=35 // pred_fallthru
          _
        %s235 = sand.u32 %s31, 1
        %s236 = scalar_lea.sflag [#allocation3], %s235
        %s237 = sand.u32 %s31, 1
        %s238 = smul.addr %s237, 4
        %s239 = scalar_lea.vmem [#allocation2], %s238
        %p240 = pneg %p44
        %p241 = pneg %p41
        %p242 = pneg %p65
        %p243 = pneg %p62
        %p244 = pneg %p86
        %p245 = pneg %p83
        %p246 = pneg %p107
        %p247 = pneg %p104
        %p248 = pneg %p133
        %p249 = pneg %p130
        %s250 = sand.u32 %s120, 1
        %s251 = scalar_lea.sflag [#allocation4], %s250
        %s252 = sand.u32 %s120, 1
        %s253 = smul.addr %s252, 8
        %s254 = scalar_lea.vmem [#allocation10], %s253
        %v256 = vld [vmem:[%s218] sm:$0xf]
        %v257 = vld [vmem:[#allocation8] sm:$0xff]
        %v258 = vld [vmem:[#allocation8 + $0x8] sm:$0xff]
        %v259 = vld [vmem:[#allocation5] sm:$0xff]
        %v260 = vld [vmem:[#allocation5 + $0x8] sm:$0xff]
        %v261 = vld [vmem:[#allocation5 + $0x10] sm:$0xff]
        %v262 = vld [vmem:[#allocation5 + $0x18] sm:$0xff]
        %v263 = vlaneseq
        %v264 = vshrl.u32 %v263, 7
        %v265 = vsub.s32 0, %v264
        %v266 = vrot.slane %v257, %v265
        %v267 = vlaneseq
        %v268 = vshrl.u32 %v267, 7
        %v269 = vsub.s32 0, %v268
        %v270 = vrot.slane %v258, %v269
        %v275 = vunpack.c.l.b16 %v259
        %v276 = vunpack.c.h.b16 %v259
        %v277 = vunpack.c.l.b16 %v260
        %v278 = vunpack.c.h.b16 %v260
        %v279 = vunpack.c.l.b16 %v261
        %v280 = vunpack.c.h.b16 %v261
        %v281 = vunpack.c.l.b16 %v262
        %v282 = vunpack.c.h.b16 %v262
        %v283 = vpack.c.b16 %v277, %v275
        %v284 = vpack.c.b16 %v278, %v276
        %v285 = vpack.c.b16 %v281, %v279
        %v286 = vpack.c.b16 %v282, %v280
        %vm291 = vcmask 261120
        %v293 = vsel %vm291, %v256, 0
        %295 = vmatprep.subr.bf16.mxu0 %v284
        %296 = vmatpush1.bf16.msra.mxu0 %v283
        %297 = vmatprep.subr.bf16.mxu0 %v286
        %298 = vmatpush1.bf16.msra.mxu0 %v285
        %299 = vmatprep.subr.bf16.mxu0 0
        %300 = vmatpush1.bf16.msra.mxu0 0
        %301 = vmatprep.subr.bf16.mxu0 0
        %302 = vmatpush1.bf16.msra.mxu0 0
        %303 = vmatprep.subr.bf16.mxu0 0
        %304 = vmatpush1.bf16.msra.mxu0 0
        %305 = vmatprep.subr.bf16.mxu0 0
        %306 = vmatpush1.bf16.msra.mxu0 0
        %307 = vmatprep.subr.bf16.mxu0 0
        %308 = vmatpush1.bf16.msra.mxu0 0
        %309 = vmatprep.subr.bf16.mxu0 0
        %310 = vmatpush1.bf16.msra.mxu0 0
        %311 = vmatprep.subr.bf16.mxu0 0
        %312 = vmatpush1.bf16.msra.mxu0 0
        %313 = vmatprep.subr.bf16.mxu0 0
        %314 = vmatpush1.bf16.msra.mxu0 0
        %315 = vmatprep.subr.bf16.mxu0 0
        %316 = vmatpush1.bf16.msra.mxu0 0
        %317 = vmatprep.subr.bf16.mxu0 0
        %318 = vmatpush1.bf16.msra.mxu0 0
        %319 = vmatprep.subr.bf16.mxu0 0
        %320 = vmatpush1.bf16.msra.mxu0 0
        %321 = vmatprep.subr.bf16.mxu0 0
        %322 = vmatpush1.bf16.msra.mxu0 0
        %323 = vmatprep.subr.bf16.mxu0 0
        %324 = vmatpush1.bf16.msra.mxu0 0
        %325 = vmatprep.subr.bf16.mxu0 0
        %326 = vmatpush1.bf16.msra.mxu0 0
        %327 = vmatprep.mubr.bf16.mxu0 0
        %328 = vmatmul.mubr.bf16.gmra.mrb[0].mxu0 %v293
        %v329 = vpop.f32.mrb[0].mxu0
        %v330 = vadd.f32 %v266, %v329
        %v331 = vpop.f32.mrb[0].mxu0
        %v332 = vadd.f32 %v270, %v331
        %v333 = vpop.f32.mrb[0].mxu0
        %v334 = vpop.f32.mrb[0].mxu0
        %335 = vdwg.mxu0
        %v336 = vlaneseq
        %v337 = vand.u32 %v336, 127
        %vm338 = vcmp.lt.s32.totalorder %v337, 64
        %v339 = vsel %vm338, 1, 0
        %v340 = vcvt.s32.f32 %v339
        %341 = vadd.xlane.f32.xlu0 %v330
        %v342 = vpop.xlane.xlu0 %341
        %v343 = vmul.f32 %v342, 0.015625
        %v344 = vsub.f32 %v330, %v343
        %v345 = vmul.f32 %v344, %v340
        %v346 = vmul.f32 %v345, %v345
        %347 = vadd.xlane.f32.xlu0 %v346
        %v348 = vpop.xlane.xlu0 %347
        %v349 = vmul.f32 %v348, 0.015625
        %v350 = vadd.f32 %v349, 1e-05
        %v351 = vrsqrt.pop %v350
        %v352 = vmul.f32 %v345, %v351
        %v353 = vlaneseq
        %v354 = vshrl.u32 %v353, 7
        %v355 = vsub.s32 1, %v354
        %v356 = vrot.slane %v257, %v355
        %v357 = vmul.f32 %v352, %v356
        %v358 = vlaneseq
        %v359 = vshrl.u32 %v358, 7
        %v360 = vsub.s32 2, %v359
        %v361 = vrot.slane %v257, %v360
        %v362 = vadd.f32 %v357, %v361
        %v363 = vmax.f32 %v362, 0.0
        %364 = vadd.xlane.f32.xlu0 %v332
        %v365 = vpop.xlane.xlu0 %364
        %v366 = vmul.f32 %v365, 0.015625
        %v367 = vsub.f32 %v332, %v366
        %v368 = vmul.f32 %v367, %v340
        %v369 = vmul.f32 %v368, %v368
        %370 = vadd.xlane.f32.xlu0 %v369
        %v371 = vpop.xlane.xlu0 %370
        %v372 = vmul.f32 %v371, 0.015625
        %v373 = vadd.f32 %v372, 1e-05
        %v374 = vrsqrt.pop %v373
        %v375 = vmul.f32 %v368, %v374
        %v376 = vlaneseq
        %v377 = vshrl.u32 %v376, 7
        %v378 = vsub.s32 1, %v377
        %v379 = vrot.slane %v258, %v378
        %v380 = vmul.f32 %v375, %v379
        %v381 = vlaneseq
        %v382 = vshrl.u32 %v381, 7
        %v383 = vsub.s32 2, %v382
        %v384 = vrot.slane %v258, %v383
        %v385 = vadd.f32 %v380, %v384
        %v386 = vmax.f32 %v385, 0.0
        %v387 = vpack.c.bf16 %v363, %v363
        %v388 = vpack.c.bf16 %v386, %v386
        %v389 = vld [vmem:[#allocation7] sm:$0xff]
        %v390 = vld [vmem:[#allocation7 + $0x8] sm:$0xff]
        %v391 = vld [vmem:[#allocation7 + $0x10] sm:$0xff]
        %v392 = vld [vmem:[#allocation7 + $0x18] sm:$0xff]
        %v393 = vld [vmem:[#allocation7 + $0x20] sm:$0xff]
        %v394 = vld [vmem:[#allocation7 + $0x28] sm:$0xff]
        %v395 = vld [vmem:[#allocation7 + $0x30] sm:$0xff]
        %v396 = vld [vmem:[#allocation7 + $0x38] sm:$0xff]
        %v397 = vld [vmem:[#allocation7 + $0x40] sm:$0xff]
        %v398 = vld [vmem:[#allocation7 + $0x48] sm:$0xff]
        %v399 = vld [vmem:[#allocation7 + $0x50] sm:$0xff]
        %v400 = vld [vmem:[#allocation7 + $0x58] sm:$0xff]
        %v401 = vld [vmem:[#allocation7 + $0x60] sm:$0xff]
        %v402 = vld [vmem:[#allocation7 + $0x68] sm:$0xff]
        %v403 = vld [vmem:[#allocation7 + $0x70] sm:$0xff]
        %v404 = vld [vmem:[#allocation7 + $0x78] sm:$0xff]
        %v405 = vld [vmem:[#allocation7 + $0x80] sm:$0xff]
        %v406 = vld [vmem:[#allocation7 + $0x88] sm:$0xff]
        %v407 = vld [vmem:[#allocation7 + $0x90] sm:$0xff]
        %v408 = vld [vmem:[#allocation7 + $0x98] sm:$0xff]
        %v409 = vld [vmem:[#allocation7 + $0xa0] sm:$0xff]
        %v410 = vld [vmem:[#allocation7 + $0xa8] sm:$0xff]
        %v411 = vld [vmem:[#allocation7 + $0xb0] sm:$0xff]
        %v412 = vld [vmem:[#allocation7 + $0xb8] sm:$0xff]
        %v413 = vld [vmem:[#allocation7 + $0xc0] sm:$0xff]
        %v414 = vld [vmem:[#allocation7 + $0xc8] sm:$0xff]
        %v415 = vld [vmem:[#allocation7 + $0xd0] sm:$0xff]
        %v416 = vld [vmem:[#allocation7 + $0xd8] sm:$0xff]
        %v417 = vld [vmem:[#allocation7 + $0xe0] sm:$0xff]
        %v418 = vld [vmem:[#allocation7 + $0xe8] sm:$0xff]
        %v419 = vld [vmem:[#allocation7 + $0xf0] sm:$0xff]
        %v420 = vld [vmem:[#allocation7 + $0xf8] sm:$0xff]
        %v421 = vlaneseq
        %v422 = vshrl.u32 %v421, 7
        %v423 = vsub.s32 3, %v422
        %v424 = vrot.slane %v257, %v423
        %v425 = vlaneseq
        %v426 = vshrl.u32 %v425, 7
        %v427 = vsub.s32 3, %v426
        %v428 = vrot.slane %v258, %v427
        %v461 = vunpack.c.l.b16 %v389
        %v462 = vunpack.c.h.b16 %v389
        %v463 = vunpack.c.l.b16 %v390
        %v464 = vunpack.c.h.b16 %v390
        %v465 = vunpack.c.l.b16 %v391
        %v466 = vunpack.c.h.b16 %v391
        %v467 = vunpack.c.l.b16 %v392
        %v468 = vunpack.c.h.b16 %v392
        %v469 = vunpack.c.l.b16 %v393
        %v470 = vunpack.c.h.b16 %v393
        %v471 = vunpack.c.l.b16 %v394
        %v472 = vunpack.c.h.b16 %v394
        %v473 = vunpack.c.l.b16 %v395
        %v474 = vunpack.c.h.b16 %v395
        %v475 = vunpack.c.l.b16 %v396
        %v476 = vunpack.c.h.b16 %v396
        %v477 = vunpack.c.l.b16 %v397
        %v478 = vunpack.c.h.b16 %v397
        %v479 = vunpack.c.l.b16 %v398
        %v480 = vunpack.c.h.b16 %v398
        %v481 = vunpack.c.l.b16 %v399
        %v482 = vunpack.c.h.b16 %v399
        %v483 = vunpack.c.l.b16 %v400
        %v484 = vunpack.c.h.b16 %v400
        %v485 = vunpack.c.l.b16 %v401
        %v486 = vunpack.c.h.b16 %v401
        %v487 = vunpack.c.l.b16 %v402
        %v488 = vunpack.c.h.b16 %v402
        %v489 = vunpack.c.l.b16 %v403
        %v490 = vunpack.c.h.b16 %v403
        %v491 = vunpack.c.l.b16 %v404
        %v492 = vunpack.c.h.b16 %v404
        %v493 = vunpack.c.l.b16 %v405
        %v494 = vunpack.c.h.b16 %v405
        %v495 = vunpack.c.l.b16 %v406
        %v496 = vunpack.c.h.b16 %v406
        %v497 = vunpack.c.l.b16 %v407
        %v498 = vunpack.c.h.b16 %v407
        %v499 = vunpack.c.l.b16 %v408
        %v500 = vunpack.c.h.b16 %v408
        %v501 = vunpack.c.l.b16 %v409
        %v502 = vunpack.c.h.b16 %v409
        %v503 = vunpack.c.l.b16 %v410
        %v504 = vunpack.c.h.b16 %v410
        %v505 = vunpack.c.l.b16 %v411
        %v506 = vunpack.c.h.b16 %v411
        %v507 = vunpack.c.l.b16 %v412
        %v508 = vunpack.c.h.b16 %v412
        %v509 = vunpack.c.l.b16 %v413
        %v510 = vunpack.c.h.b16 %v413
        %v511 = vunpack.c.l.b16 %v414
        %v512 = vunpack.c.h.b16 %v414
        %v513 = vunpack.c.l.b16 %v415
        %v514 = vunpack.c.h.b16 %v415
        %v515 = vunpack.c.l.b16 %v416
        %v516 = vunpack.c.h.b16 %v416
        %v517 = vunpack.c.l.b16 %v417
        %v518 = vunpack.c.h.b16 %v417
        %v519 = vunpack.c.l.b16 %v418
        %v520 = vunpack.c.h.b16 %v418
        %v521 = vunpack.c.l.b16 %v419
        %v522 = vunpack.c.h.b16 %v419
        %v523 = vunpack.c.l.b16 %v420
        %v524 = vunpack.c.h.b16 %v420
        %v525 = vpack.c.b16 %v463, %v461
        %v526 = vpack.c.b16 %v464, %v462
        %v527 = vpack.c.b16 %v467, %v465
        %v528 = vpack.c.b16 %v468, %v466
        %v529 = vpack.c.b16 %v471, %v469
        %v530 = vpack.c.b16 %v472, %v470
        %v531 = vpack.c.b16 %v475, %v473
        %v532 = vpack.c.b16 %v476, %v474
        %v533 = vpack.c.b16 %v479, %v477
        %v534 = vpack.c.b16 %v480, %v478
        %v535 = vpack.c.b16 %v483, %v481
        %v536 = vpack.c.b16 %v484, %v482
        %v537 = vpack.c.b16 %v487, %v485
        %v538 = vpack.c.b16 %v488, %v486
        %v539 = vpack.c.b16 %v491, %v489
        %v540 = vpack.c.b16 %v492, %v490
        %v541 = vpack.c.b16 %v495, %v493
        %v542 = vpack.c.b16 %v496, %v494
        %v543 = vpack.c.b16 %v499, %v497
        %v544 = vpack.c.b16 %v500, %v498
        %v545 = vpack.c.b16 %v503, %v501
        %v546 = vpack.c.b16 %v504, %v502
        %v547 = vpack.c.b16 %v507, %v505
        %v548 = vpack.c.b16 %v508, %v506
        %v549 = vpack.c.b16 %v511, %v509
        %v550 = vpack.c.b16 %v512, %v510
        %v551 = vpack.c.b16 %v515, %v513
        %v552 = vpack.c.b16 %v516, %v514
        %v553 = vpack.c.b16 %v519, %v517
        %v554 = vpack.c.b16 %v520, %v518
        %v555 = vpack.c.b16 %v523, %v521
        %v556 = vpack.c.b16 %v524, %v522
        %589 = vmatprep.subr.bf16.mxu0 %v526
        %590 = vmatpush1.bf16.msra.mxu0 %v525
        %591 = vmatprep.subr.bf16.mxu0 %v528
        %592 = vmatpush1.bf16.msra.mxu0 %v527
        %593 = vmatprep.subr.bf16.mxu0 %v530
        %594 = vmatpush1.bf16.msra.mxu0 %v529
        %595 = vmatprep.subr.bf16.mxu0 %v532
        %596 = vmatpush1.bf16.msra.mxu0 %v531
        %597 = vmatprep.subr.bf16.mxu0 %v534
        %598 = vmatpush1.bf16.msra.mxu0 %v533
        %599 = vmatprep.subr.bf16.mxu0 %v536
        %600 = vmatpush1.bf16.msra.mxu0 %v535
        %601 = vmatprep.subr.bf16.mxu0 %v538
        %602 = vmatpush1.bf16.msra.mxu0 %v537
        %603 = vmatprep.subr.bf16.mxu0 %v540
        %604 = vmatpush1.bf16.msra.mxu0 %v539
        %605 = vmatprep.subr.bf16.mxu0 %v542
        %606 = vmatpush1.bf16.msra.mxu0 %v541
        %607 = vmatprep.subr.bf16.mxu0 %v544
        %608 = vmatpush1.bf16.msra.mxu0 %v543
        %609 = vmatprep.subr.bf16.mxu0 %v546
        %610 = vmatpush1.bf16.msra.mxu0 %v545
        %611 = vmatprep.subr.bf16.mxu0 %v548
        %612 = vmatpush1.bf16.msra.mxu0 %v547
        %613 = vmatprep.subr.bf16.mxu0 %v550
        %614 = vmatpush1.bf16.msra.mxu0 %v549
        %615 = vmatprep.subr.bf16.mxu0 %v552
        %616 = vmatpush1.bf16.msra.mxu0 %v551
        %617 = vmatprep.subr.bf16.mxu0 %v554
        %618 = vmatpush1.bf16.msra.mxu0 %v553
        %619 = vmatprep.subr.bf16.mxu0 %v556
        %620 = vmatpush1.bf16.msra.mxu0 %v555
        %621 = vmatprep.mubr.bf16.mxu0 %v388
        %622 = vmatmul.mubr.bf16.gmra.mrb[0].mxu0 %v387
        %v623 = vpop.f32.mrb[0].mxu0
        %v624 = vadd.f32 %v424, %v623
        %v625 = vpop.f32.mrb[0].mxu0
        %v626 = vadd.f32 %v428, %v625
        %v627 = vpop.f32.mrb[0].mxu0
        %v628 = vpop.f32.mrb[0].mxu0
        %629 = vdwg.mxu0
        %v630 = vpack.c.bf16 %v624, %v624
        %v631 = vpack.c.bf16 %v626, %v626
        %vm632 = vcmask 1043456
        %v635 = vsel %vm632, %v631, 0
        %637 = vmatprep.subr.bf16.mxu0 0
        %638 = vmatpush1.bf16.xpose.msra.mxu0 %v635
        %639 = vmatprep.subr.bf16.mxu0 0
        %640 = vmatpush1.bf16.xpose.msra.mxu0 0
        %641 = vmatprep.subr.bf16.mxu0 0
        %642 = vmatpush1.bf16.xpose.msra.mxu0 0
        %643 = vmatprep.subr.bf16.mxu0 0
        %644 = vmatpush1.bf16.xpose.msra.mxu0 0
        %645 = vmatprep.subr.bf16.mxu0 0
        %646 = vmatpush1.bf16.xpose.msra.mxu0 0
        %647 = vmatprep.subr.bf16.mxu0 0
        %648 = vmatpush1.bf16.xpose.msra.mxu0 0
        %649 = vmatprep.subr.bf16.mxu0 0
        %650 = vmatpush1.bf16.xpose.msra.mxu0 0
        %651 = vmatprep.subr.bf16.mxu0 0
        %652 = vmatpush1.bf16.xpose.msra.mxu0 0
        %653 = vmatprep.subr.bf16.mxu0 0
        %654 = vmatpush1.bf16.xpose.msra.mxu0 0
        %655 = vmatprep.subr.bf16.mxu0 0
        %656 = vmatpush1.bf16.xpose.msra.mxu0 0
        %657 = vmatprep.subr.bf16.mxu0 0
        %658 = vmatpush1.bf16.xpose.msra.mxu0 0
        %659 = vmatprep.subr.bf16.mxu0 0
        %660 = vmatpush1.bf16.xpose.msra.mxu0 0
        %661 = vmatprep.subr.bf16.mxu0 0
        %662 = vmatpush1.bf16.xpose.msra.mxu0 0
        %663 = vmatprep.subr.bf16.mxu0 0
        %664 = vmatpush1.bf16.xpose.msra.mxu0 0
        %665 = vmatprep.subr.bf16.mxu0 0
        %666 = vmatpush1.bf16.xpose.msra.mxu0 0
        %667 = vmatprep.subr.bf16.mxu0 0
        %668 = vmatpush1.bf16.xpose.msra.mxu0 0
        %669 = vmatprep.mubr.bf16.mxu0 0
        %670 = vmatmul.mubr.bf16.gmra.mrb[0].mxu0 %v630
        %v671 = vpop.f32.mrb[0].mxu0
        %v672 = vadd.f32 0.0, %v671
        %v673 = vpop.f32.mrb[0].mxu0
        %v674 = vpop.f32.mrb[0].mxu0
        %v675 = vpop.f32.mrb[0].mxu0
        %676 = vdwg.mxu0
        %677 = vst [vmem:[%s254] sm:$0xff] %v672
        %s678 = sand.u32 %s120, 1
        %s679 = scalar_lea.sflag [#allocation4], %s678
        %s680 = sand.u32 %s120, 1
        %s681 = smul.addr %s680, 8
        %s682 = scalar_lea.vmem [#allocation10], %s681
        // Predicated region
        $region53: #{tpu_custom_call.1} parent=35 // pred_check
          %p683 = pneg %p130
        $region54: #{tpu_custom_call.1} parent=35 // pred_check_branch
          %685 = sbr.rel (%p683) target = $region56
        $region55: #{tpu_custom_call.1} parent=35 // pred_region
          %s687 = ssub.s32 128, 128
          %688 = vsyncadd %s679, %s687
          %s689 = smul.addr %s23, 128
          %s690 = scalar_lea.hbm %s4, %s689
          %s692 = sshll.u32 %s682, 4
          %s693 = int_to_ptr.vmem [resolvable:$true] %s692
          %695 = dma.vmem_to_hbm [thread:$0]  %s693, 128, %s690, %s679
        $region56: #{tpu_custom_call.1} parent=35 // pred_fallthru
          _
      $region36: #{tpu_custom_call.1} parent=5 // pred_fallthru
        _
      %p696 = scmp.le.s32.totalorder 2, %s18
      // Predicated region
      $region57: #{tpu_custom_call.1} parent=5 // pred_check
        %p697 = pneg %p696
      $region58: #{tpu_custom_call.1} parent=5 // pred_check_branch
        %699 = sbr.rel (%p697) target = $region60
      $region59: #{tpu_custom_call.1} parent=5 // pred_region
        %s700 = ssub.s32 %s18, 2
        // Predicated region
        $region61: #{tpu_custom_call.1} parent=59 // pred_check
          %p701 = pneg %p136
        $region62: #{tpu_custom_call.1} parent=59 // pred_check_branch
          %703 = sbr.rel (%p701) target = $region64
        $region63: #{tpu_custom_call.1} parent=59 // pred_region
          %s704 = sand.u32 %s121, 1
          %s705 = scalar_lea.sflag [#allocation4], %s704
          %s706 = sand.u32 %s121, 1
          %s707 = smul.addr %s706, 8
          %s708 = scalar_lea.vmem [#allocation10], %s707
          %709 = dma.done %s705, 128
        $region64: #{tpu_custom_call.1} parent=59 // pred_fallthru
          _
      $region60: #{tpu_custom_call.1} parent=5 // pred_fallthru
        _
    $region6: #{tpu_custom_call.1} parent=1 // loop_footer
      %s22 = sadd.s32 1, %s18
    $region7: #{tpu_custom_call.1} parent=1 // loop_footer_branch
      %17 = sbr.rel target = $region3
    $region8: #{tpu_custom_call.1} parent=1 // loop_exit
      _
    %710 = vsyncpa [#allocation3], 1
    %s711 = scalar_lea.sflag [#allocation3], 1
    %712 = vsyncpa %s711, 1
    %713 = vsyncpa [#allocation6], 1
    %714 = vsyncpa [#allocation9], 1
    %715 = vsyncpa [#allocation4], 1
    %s716 = scalar_lea.sflag [#allocation4], 1
    %717 = vsyncpa %s716, 1

</llo_original>
